<compile_context>
chip_gen: v7x
topology: tpu7x:2x2x1
jax: 0.10.0
libtpu: 0.0.40
codegen_flags: <defaults>
</compile_context>

<pallas_src>
import jax
import jax.numpy as jnp
from jax.experimental import pallas as pl
from jax.experimental.pallas import tpu as pltpu

EPS = 1e-5
TN = 128   # output-feature tile width (lane-dense)


def _kernel(x_ref, w1wd_ref, bn1d_ref, w2_ref, bn2_ref, o_ref, h1_sc, idn_sc):
    j = pl.program_id(0)
    f_out = h1_sc.shape[1]
    tn = o_ref.shape[1]

    # ---- stage 1 (tile 0 only): h1 = relu(bn1(x @ w1)), idn = bn_d(x @ wd) ----
    @pl.when(j == 0)
    def _():
        x = x_ref[...]                                          # bf16 [B, F_in]
        hcat = jnp.dot(x, w1wd_ref[...],
                       preferred_element_type=jnp.float32)      # f32 [B, 2*F_out]
        mean = jnp.mean(hcat, axis=0, keepdims=True)
        cen = hcat - mean
        var = jnp.mean(cen * cen, axis=0, keepdims=True)        # two-pass (stable)
        bn = bn1d_ref[...]                                      # [2, 2*F_out]
        scale = bn[0:1, :] * jax.lax.rsqrt(var + EPS)           # hoisted per-feature
        normed = cen * scale + bn[1:2, :]
        h1_sc[...] = jnp.maximum(normed[:, :f_out], 0.0).astype(h1_sc.dtype)
        idn_sc[...] = normed[:, f_out:]

    # ---- stage 2 (every tile j): out_j = relu(bn2(h1 @ w2[:, j]) + idn[:, j]) --
    h2 = jnp.dot(h1_sc[...], w2_ref[...],
                 preferred_element_type=jnp.float32)            # f32 [B, TN]
    mean2 = jnp.mean(h2, axis=0, keepdims=True)
    cen2 = h2 - mean2
    var2 = jnp.mean(cen2 * cen2, axis=0, keepdims=True)
    bn2 = bn2_ref[...]                                          # [2, TN]
    scale2 = bn2[0:1, :] * jax.lax.rsqrt(var2 + EPS)
    idn = idn_sc[:, pl.ds(pl.multiple_of(j * tn, tn), tn)]
    o_ref[...] = jnp.maximum(cen2 * scale2 + bn2[1:2, :] + idn, 0.0).astype(o_ref.dtype)


def residual_mlp_block(x, params, *, tn=TN):
    """x: [B, in_features] f32.  params: PyTorch-style params (weights pre-transposed)."""
    B, f_in = x.shape
    f_out = params["w2"].shape[0]
    assert f_out % tn == 0, "out_features must be a multiple of the 128-lane tile"
    assert B % 8 == 0, "batch should be a multiple of 8 sublanes"
    n_tiles = f_out // tn

    # bf16 operands for the MXU; BN parameters stay f32.
    x_bf = x.astype(jnp.bfloat16)
    w1wd = jnp.concatenate([params["w1"], params["wd"]], axis=1).astype(jnp.bfloat16)
    w2 = params["w2"].astype(jnp.bfloat16)
    # Packed per-feature BN params: row 0 = gamma, row 1 = beta.  Linear biases
    # are intentionally NOT passed: they cancel exactly inside training-mode BN.
    bn1d = jnp.concatenate(
        [jnp.concatenate([params["g1"], params["gd"]], axis=1),
         jnp.concatenate([params["be1"], params["bed"]], axis=1)], axis=0)   # [2, 2F]
    bn2 = jnp.concatenate([params["g2"], params["be2"]], axis=0)             # [2, F]

    flops = 2 * B * f_in * (2 * f_out) + 2 * B * f_out * f_out
    bytes_accessed = (x_bf.size * 2 + w1wd.size * 2 + w2.size * 2
                      + bn1d.size * 4 + bn2.size * 4 + B * f_out * 4)

    grid_spec = pltpu.PrefetchScalarGridSpec(
        num_scalar_prefetch=0,
        grid=(n_tiles,),
        in_specs=[
            pl.BlockSpec((B, f_in), lambda j: (0, 0)),           # x (resident)
            pl.BlockSpec((f_in, 2 * f_out), lambda j: (0, 0)),   # packed w1 | wd
            pl.BlockSpec((2, 2 * f_out), lambda j: (0, 0)),      # packed bn1 | bn_d
            pl.BlockSpec((f_out, tn), lambda j: (0, j)),         # w2 column tile
            pl.BlockSpec((2, tn), lambda j: (0, j)),             # packed bn2 tile
        ],
        out_specs=pl.BlockSpec((B, tn), lambda j: (0, j)),
        scratch_shapes=[
            pltpu.VMEM((B, f_out), jnp.bfloat16),   # h1 (LHS of fc2)
            pltpu.VMEM((B, f_out), jnp.float32),    # downsample identity
        ],
    )

    return pl.pallas_call(
        _kernel,
        out_shape=jax.ShapeDtypeStruct((B, f_out), jnp.float32),
        grid_spec=grid_spec,
        compiler_params=pltpu.CompilerParams(
            # Tiles j>0 read scratch written at tile 0 -> must be "arbitrary"
            # (a "parallel"/2-TC variant on v7x would need to duplicate stage 1).
            dimension_semantics=("arbitrary",),
            vmem_limit_bytes=32 * 1024 * 1024,
        ),
        cost_estimate=pl.CostEstimate(
            flops=flops, transcendentals=3 * f_out, bytes_accessed=bytes_accessed),
    )(x_bf, w1wd, bn1d, w2, bn2)


def make_params(key, in_features, out_features):
    ks = jax.random.split(key, 9)
    scale1 = 1.0 / jnp.sqrt(in_features)
    scale2 = 1.0 / jnp.sqrt(out_features)
    # Linear weights stored transposed: [F_in, F_out]  (PyTorch stores [out, in]).
    return dict(
        w1=jax.random.uniform(ks[0], (in_features, out_features), jnp.float32, -scale1, scale1),
        b1=jax.random.uniform(ks[1], (1, out_features), jnp.float32, -scale1, scale1),
        g1=1.0 + 0.1 * jax.random.normal(ks[2], (1, out_features), jnp.float32),
        be1=0.1 * jax.random.normal(ks[3], (1, out_features), jnp.float32),
        w2=jax.random.uniform(ks[4], (out_features, out_features), jnp.float32, -scale2, scale2),
        b2=jax.random.uniform(ks[5], (1, out_features), jnp.float32, -scale2, scale2),
        g2=jnp.ones((1, out_features), jnp.float32),
        be2=jnp.zeros((1, out_features), jnp.float32),
        wd=jax.random.uniform(ks[6], (in_features, out_features), jnp.float32, -scale1, scale1),
        bd=jax.random.uniform(ks[7], (1, out_features), jnp.float32, -scale1, scale1),
        gd=1.0 + 0.1 * jax.random.normal(ks[8], (1, out_features), jnp.float32),
        bed=jnp.zeros((1, out_features), jnp.float32),
    )


def _bn_ref(h, gamma, beta):
    # BatchNorm1d, training-mode statistics (biased variance), f32 math.
    mean = jnp.mean(h, axis=0, keepdims=True)
    var = jnp.mean((h - mean) * (h - mean), axis=0, keepdims=True)
    return (h - mean) * jax.lax.rsqrt(var + EPS) * gamma + beta


def reference(x, p):
    # Full-precision PyTorch-equivalent forward (biases included).
    h1 = jnp.maximum(_bn_ref(x @ p["w1"] + p["b1"], p["g1"], p["be1"]), 0.0)
    h2 = _bn_ref(h1 @ p["w2"] + p["b2"], p["g2"], p["be2"])
    idn = _bn_ref(x @ p["wd"] + p["bd"], p["gd"], p["bed"])
    return jnp.maximum(h2 + idn, 0.0)


if __name__ == "__main__":
    # Lane-dense (128-multiple) feature dims, sublane-multiple batch; grid has
    # 2 feature tiles so both the tile-0 and tile-j>0 kernel paths execute.
    B, in_features, out_features = 8, 128, 256
    key = jax.random.PRNGKey(0)
    kx, kp = jax.random.split(key)
    x = jax.random.normal(kx, (B, in_features), jnp.float32)
    params = make_params(kp, in_features, out_features)

    out = jax.block_until_ready(residual_mlp_block(x, params))
    ref = reference(x, params)

    assert out.shape == (B, out_features)
    # bf16 matmul operands (f32 accumulation) vs. the pure-f32 reference.
    max_err = float(jnp.max(jnp.abs(out - ref)))
    assert jnp.allclose(out, ref, atol=5e-2, rtol=5e-2), f"mismatch vs reference (max abs err {max_err})"
    print("KERNEL_OK")
</pallas_src>

<mosaic_0001>
module attributes {stable_mosaic.version = 11 : i64} {
  func.func @_kernel(%arg0: i32, %arg1: memref<8x128xbf16, #tpu.memory_space<vmem>>, %arg2: memref<128x512xbf16, #tpu.memory_space<vmem>>, %arg3: memref<2x512xf32, #tpu.memory_space<vmem>>, %arg4: memref<256x128xbf16, #tpu.memory_space<vmem>>, %arg5: memref<2x128xf32, #tpu.memory_space<vmem>>, %arg6: memref<8x128xf32, #tpu.memory_space<vmem>>, %arg7: memref<8x256xbf16, #tpu.memory_space<vmem>>, %arg8: memref<8x256xf32, #tpu.memory_space<vmem>>) attributes {dimension_semantics = [#tpu.dimension_semantics<arbitrary>], iteration_bounds = array<i64: 2>, scalar_prefetch = 0 : i64, scratch_operands = 2 : i64, tpu.core_type = #tpu.core_type<tc>, window_params = [{pipeline_mode = #tpu.pipeline_mode<synchronous>, transform_indices = @transform_0, window_bounds = array<i64: 8, 128>}, {pipeline_mode = #tpu.pipeline_mode<synchronous>, transform_indices = @transform_1, window_bounds = array<i64: 128, 512>}, {pipeline_mode = #tpu.pipeline_mode<synchronous>, transform_indices = @transform_2, window_bounds = array<i64: 2, 512>}, {transform_indices = @transform_3, window_bounds = array<i64: 256, 128>}, {transform_indices = @transform_4, window_bounds = array<i64: 2, 128>}, {transform_indices = @transform_5, window_bounds = array<i64: 8, 128>}]} {
    %c0_i32 = arith.constant 0 : i32
    %0 = arith.cmpi eq, %arg0, %c0_i32 : i32
    %1 = arith.extui %0 : i1 to i32
    %c0_i32_0 = arith.constant 0 : i32
    %2 = arith.cmpi ne, %1, %c0_i32_0 : i32
    scf.if %2 {
      %c0_15 = arith.constant 0 : index
      %c0_16 = arith.constant 0 : index
      %36 = vector.load %arg1[%c0_15, %c0_16] : memref<8x128xbf16, #tpu.memory_space<vmem>>, vector<8x128xbf16>
      %c0_17 = arith.constant 0 : index
      %c0_18 = arith.constant 0 : index
      %37 = vector.load %arg2[%c0_17, %c0_18] : memref<128x512xbf16, #tpu.memory_space<vmem>>, vector<128x512xbf16>
      %cst_19 = arith.constant dense<0.000000e+00> : vector<8x512xf32>
      %38 = tpu.matmul %36, %37, %cst_19 {dimension_numbers = #tpu.dot_dimension_numbers<[1], [0], [0], [1], [0, 0, 1, 1], [], []>} : vector<8x128xbf16>, vector<128x512xbf16>, vector<8x512xf32> -> vector<8x512xf32>
      %cst_20 = arith.constant dense<0.000000e+00> : vector<512xf32>
      %39 = vector.multi_reduction <add>, %38, %cst_20 [0] : vector<8x512xf32> to vector<512xf32>
      %40 = vector.shape_cast %39 : vector<512xf32> to vector<1x512xf32>
      %cst_21 = arith.constant 8.000000e+00 : f32
      %41 = vector.broadcast %cst_21 : f32 to vector<1x512xf32>
      %42 = arith.divf %40, %41 : vector<1x512xf32>
      %43 = vector.broadcast %42 : vector<1x512xf32> to vector<8x512xf32>
      %44 = arith.subf %38, %43 : vector<8x512xf32>
      %45 = arith.mulf %44, %44 : vector<8x512xf32>
      %cst_22 = arith.constant dense<0.000000e+00> : vector<512xf32>
      %46 = vector.multi_reduction <add>, %45, %cst_22 [0] : vector<8x512xf32> to vector<512xf32>
      %47 = vector.shape_cast %46 : vector<512xf32> to vector<1x512xf32>
      %cst_23 = arith.constant 8.000000e+00 : f32
      %48 = vector.broadcast %cst_23 : f32 to vector<1x512xf32>
      %49 = arith.divf %47, %48 : vector<1x512xf32>
      %c0_24 = arith.constant 0 : index
      %c0_25 = arith.constant 0 : index
      %50 = vector.load %arg3[%c0_24, %c0_25] : memref<2x512xf32, #tpu.memory_space<vmem>>, vector<2x512xf32>
      %51 = vector.extract_strided_slice %50 {offsets = [0, 0], sizes = [1, 512], strides = [1, 1]} : vector<2x512xf32> to vector<1x512xf32>
      %cst_26 = arith.constant 9.99999974E-6 : f32
      %52 = vector.broadcast %cst_26 : f32 to vector<1x512xf32>
      %53 = arith.addf %49, %52 : vector<1x512xf32>
      %54 = math.rsqrt %53 : vector<1x512xf32>
      %55 = arith.mulf %51, %54 : vector<1x512xf32>
      %56 = vector.broadcast %55 : vector<1x512xf32> to vector<8x512xf32>
      %57 = arith.mulf %44, %56 : vector<8x512xf32>
      %58 = vector.extract_strided_slice %50 {offsets = [1, 0], sizes = [1, 512], strides = [1, 1]} : vector<2x512xf32> to vector<1x512xf32>
      %59 = vector.broadcast %58 : vector<1x512xf32> to vector<8x512xf32>
      %60 = arith.addf %57, %59 : vector<8x512xf32>
      %61 = vector.extract_strided_slice %60 {offsets = [0, 0], sizes = [8, 256], strides = [1, 1]} : vector<8x512xf32> to vector<8x256xf32>
      %cst_27 = arith.constant 0.000000e+00 : f32
      %62 = vector.broadcast %cst_27 : f32 to vector<8x256xf32>
      %63 = arith.maximumf %61, %62 : vector<8x256xf32>
      %64 = arith.truncf %63 : vector<8x256xf32> to vector<8x256xbf16>
      %c0_28 = arith.constant 0 : index
      %c0_29 = arith.constant 0 : index
      %65 = vector.load %arg7[%c0_28, %c0_29] : memref<8x256xbf16, #tpu.memory_space<vmem>>, vector<8x256xbf16>
      tpu.vector_store %arg7[%c0_28, %c0_29], %64 {strides = array<i32>} : memref<8x256xbf16, #tpu.memory_space<vmem>>, vector<8x256xbf16>,
      %66 = vector.extract_strided_slice %60 {offsets = [0, 256], sizes = [8, 256], strides = [1, 1]} : vector<8x512xf32> to vector<8x256xf32>
      %c0_30 = arith.constant 0 : index
      %c0_31 = arith.constant 0 : index
      %67 = vector.load %arg8[%c0_30, %c0_31] : memref<8x256xf32, #tpu.memory_space<vmem>>, vector<8x256xf32>
      tpu.vector_store %arg8[%c0_30, %c0_31], %66 {strides = array<i32>} : memref<8x256xf32, #tpu.memory_space<vmem>>, vector<8x256xf32>,
    } else {
    }
    %c0 = arith.constant 0 : index
    %c0_1 = arith.constant 0 : index
    %3 = vector.load %arg7[%c0, %c0_1] : memref<8x256xbf16, #tpu.memory_space<vmem>>, vector<8x256xbf16>
    %c0_2 = arith.constant 0 : index
    %c0_3 = arith.constant 0 : index
    %4 = vector.load %arg4[%c0_2, %c0_3] : memref<256x128xbf16, #tpu.memory_space<vmem>>, vector<256x128xbf16>
    %cst = arith.constant dense<0.000000e+00> : vector<8x128xf32>
    %5 = tpu.matmul %3, %4, %cst {dimension_numbers = #tpu.dot_dimension_numbers<[1], [0], [0], [1], [0, 0, 1, 1], [], []>} : vector<8x256xbf16>, vector<256x128xbf16>, vector<8x128xf32> -> vector<8x128xf32>
    %cst_4 = arith.constant dense<0.000000e+00> : vector<128xf32>
    %6 = vector.multi_reduction <add>, %5, %cst_4 [0] : vector<8x128xf32> to vector<128xf32>
    %7 = vector.shape_cast %6 : vector<128xf32> to vector<1x128xf32>
    %cst_5 = arith.constant 8.000000e+00 : f32
    %8 = vector.broadcast %cst_5 : f32 to vector<1x128xf32>
    %9 = arith.divf %7, %8 : vector<1x128xf32>
    %10 = vector.broadcast %9 : vector<1x128xf32> to vector<8x128xf32>
    %11 = arith.subf %5, %10 : vector<8x128xf32>
    %12 = arith.mulf %11, %11 : vector<8x128xf32>
    %cst_6 = arith.constant dense<0.000000e+00> : vector<128xf32>
    %13 = vector.multi_reduction <add>, %12, %cst_6 [0] : vector<8x128xf32> to vector<128xf32>
    %14 = vector.shape_cast %13 : vector<128xf32> to vector<1x128xf32>
    %cst_7 = arith.constant 8.000000e+00 : f32
    %15 = vector.broadcast %cst_7 : f32 to vector<1x128xf32>
    %16 = arith.divf %14, %15 : vector<1x128xf32>
    %c0_8 = arith.constant 0 : index
    %c0_9 = arith.constant 0 : index
    %17 = vector.load %arg5[%c0_8, %c0_9] : memref<2x128xf32, #tpu.memory_space<vmem>>, vector<2x128xf32>
    %18 = vector.extract_strided_slice %17 {offsets = [0, 0], sizes = [1, 128], strides = [1, 1]} : vector<2x128xf32> to vector<1x128xf32>
    %cst_10 = arith.constant 9.99999974E-6 : f32
    %19 = vector.broadcast %cst_10 : f32 to vector<1x128xf32>
    %20 = arith.addf %16, %19 : vector<1x128xf32>
    %21 = math.rsqrt %20 : vector<1x128xf32>
    %22 = arith.mulf %18, %21 : vector<1x128xf32>
    %c128_i32 = arith.constant 128 : i32
    %23 = arith.muli %arg0, %c128_i32 : i32
    %24 = tpu.assume_multiple %23, 128 : i32
    %c0_11 = arith.constant 0 : index
    %25 = arith.index_cast %24 : i32 to index
    %26 = vector.load %arg8[%c0_11, %25] : memref<8x256xf32, #tpu.memory_space<vmem>>, vector<8x128xf32>
    %27 = vector.broadcast %22 : vector<1x128xf32> to vector<8x128xf32>
    %28 = arith.mulf %11, %27 : vector<8x128xf32>
    %29 = vector.extract_strided_slice %17 {offsets = [1, 0], sizes = [1, 128], strides = [1, 1]} : vector<2x128xf32> to vector<1x128xf32>
    %30 = vector.broadcast %29 : vector<1x128xf32> to vector<8x128xf32>
    %31 = arith.addf %28, %30 : vector<8x128xf32>
    %32 = arith.addf %31, %26 : vector<8x128xf32>
    %cst_12 = arith.constant 0.000000e+00 : f32
    %33 = vector.broadcast %cst_12 : f32 to vector<8x128xf32>
    %34 = arith.maximumf %32, %33 : vector<8x128xf32>
    %c0_13 = arith.constant 0 : index
    %c0_14 = arith.constant 0 : index
    %35 = vector.load %arg6[%c0_13, %c0_14] : memref<8x128xf32, #tpu.memory_space<vmem>>, vector<8x128xf32>
    tpu.vector_store %arg6[%c0_13, %c0_14], %34 {strides = array<i32>} : memref<8x128xf32, #tpu.memory_space<vmem>>, vector<8x128xf32>,
    return
  }
  func.func @transform_0(%arg0: i32) -> (i32, i32) {
    %c0_i32 = arith.constant 0 : i32
    %c0_i32_0 = arith.constant 0 : i32
    %c0_i32_1 = arith.constant 0 : i32
    return %c0_i32, %c0_i32_0 : i32, i32
  }
  func.func @transform_1(%arg0: i32) -> (i32, i32) {
    %c0_i32 = arith.constant 0 : i32
    %c0_i32_0 = arith.constant 0 : i32
    %c0_i32_1 = arith.constant 0 : i32
    return %c0_i32, %c0_i32_0 : i32, i32
  }
  func.func @transform_2(%arg0: i32) -> (i32, i32) {
    %c0_i32 = arith.constant 0 : i32
    %c0_i32_0 = arith.constant 0 : i32
    %c0_i32_1 = arith.constant 0 : i32
    return %c0_i32, %c0_i32_0 : i32, i32
  }
  func.func @transform_3(%arg0: i32) -> (i32, i32) {
    %c0_i32 = arith.constant 0 : i32
    %c0_i32_0 = arith.constant 0 : i32
    return %c0_i32, %arg0 : i32, i32
  }
  func.func @transform_4(%arg0: i32) -> (i32, i32) {
    %c0_i32 = arith.constant 0 : i32
    %c0_i32_0 = arith.constant 0 : i32
    return %c0_i32, %arg0 : i32, i32
  }
  func.func @transform_5(%arg0: i32) -> (i32, i32) {
    %c0_i32 = arith.constant 0 : i32
    %c0_i32_0 = arith.constant 0 : i32
    return %c0_i32, %arg0 : i32, i32
  }
}

</mosaic_0001>

<llo_original>
// kernel: tpu_custom_call.1
$region0: #{tpu_custom_call.1}
  #allocation0 [shape = 'u32[]', space=smem, size = 0x4, offset = 0x4, fixed_abs, tag = 'smem constant byte address 0x4 - core index']
  #allocation1 [shape = 'u32[144,128]{1,0:T(1,128)}', space=vmem, size = 0x12000, scoped, tag = 'internal scratch']
  #allocation2 [shape = 'bf16[8,256]{1,0:T(8,128)(2,1)}', space=vmem, size = 0x1000, scoped, tag = 'scratch operand']
  #allocation3 [shape = 'f32[8,256]{1,0:T(8,128)}', space=vmem, size = 0x2000, scoped, tag = 'scratch operand']
  %s0 = inlined_call_operand.hbm [shape: bf16[8,128], index: 0, kind: input, shape index: {}]
  %s1 = inlined_call_operand.hbm [shape: bf16[128,512], index: 1, kind: input, shape index: {}]
  %s2 = inlined_call_operand.hbm [shape: f32[2,512], index: 2, kind: input, shape index: {}]
  %s3 = inlined_call_operand.hbm [shape: bf16[256,256], index: 3, kind: input, shape index: {}]
  %s4 = inlined_call_operand.vmem [shape: f32[2,256], index: 4, kind: input, shape index: {}]
  %s5 = inlined_call_operand.hbm [shape: f32[8,256], index: 5, kind: output, shape index: {}]
  %s6 = sld [smem:[#allocation0]]
  $region73: #{tpu_custom_call.1} parent=0
    _
  %s8 = ssub.s32 1, %s6
  %s9 = scalar_select 0, %s8, %s6
  $region1: #{tpu_custom_call.1} parent=0
    #allocation4 [shape = 'u8[2048]{0}', space=vmem, size = 0x800, scoped, tag = 'input window, operand 0, single buffered']
    #allocation5 [shape = 's32[2]{0}', space=sflag, size = 0x8, scoped, tag = 'scoped memory for tpu_custom_call.1']
    #allocation6 [shape = 's32[2]{0}', space=sflag, size = 0x8, scoped, tag = 'scoped memory for tpu_custom_call.1']
    #allocation7 [shape = 'u8[131072]{0}', space=vmem, size = 0x20000, scoped, tag = 'input window, operand 1, single buffered']
    #allocation8 [shape = 's32[1]{0}', space=sflag, size = 0x4, scoped, tag = 'scoped memory for tpu_custom_call.1']
    #allocation9 [shape = 'u8[4096]{0}', space=vmem, size = 0x1000, scoped, tag = 'input window, operand 2, single buffered']
    #allocation10 [shape = 'u8[131072]{0}', space=vmem, size = 0x20000, scoped, tag = 'input window, operand 3']
    #allocation11 [shape = 's32[2]{0}', space=sflag, size = 0x8, scoped, tag = 'scoped memory for tpu_custom_call.1']
    #allocation12 [shape = 'u8[8192]{0}', space=vmem, size = 0x2000, scoped, tag = 'output window, operand 0']
    %10 = vsyncpa [#allocation5], 0
    %11 = vsyncpa [#allocation8], 0
    %12 = vsyncpa [#allocation11], 0
    %s13 = scalar_lea.sflag [#allocation11], 1
    %14 = vsyncpa %s13, 0
    %15 = vsyncpa [#allocation6], 0
    %s16 = scalar_lea.sflag [#allocation6], 1
    %17 = vsyncpa %s16, 0
    loop: start=0, step=1, limit=4
    $region2: #{tpu_custom_call.1} parent=1 // loop_pre_header
      _
    $region3: #{tpu_custom_call.1} parent=1 // loop_header
      %s19 = sphi 0, %s23
      %p20 = scmp.ge.s32.totalorder %s19, 4
      %s27 = sphi 0, %s27
      %s29 = sphi 0, %s27
      %s30 = sphi 0, %s29
      %s44 = sphi 0, %s30
      %s48 = sphi 0, %s48
      %s50 = sphi 0, %s48
      %s51 = sphi 0, %s50
      %s65 = sphi 0, %s51
      %s69 = sphi 0, %s69
      %s71 = sphi 0, %s69
      %s72 = sphi 0, %s71
      %s86 = sphi 0, %s72
      %s92 = sphi 0, %s94
      %s95 = sphi 0, %s92
      %s96 = sphi 0, %s95
      %s112 = sphi 0, %s96
      %s118 = sphi 0, %s120
      %s121 = sphi 0, %s118
      %s122 = sphi 0, %s121
      %s138 = sphi 0, %s122
      %s144 = sphi 0, %s146
      %s147 = sphi 0, %s144
      %s148 = sphi 0, %s147
      %s164 = sphi 0, %s148
    $region4: #{tpu_custom_call.1} parent=1 // loop_header_branch
      %22 = sbr.rel (%p20) target = $region8
    $region5: #{tpu_custom_call.1} parent=1 // loop_body
      %s24 = ssub.s32 %s19, 1
      %s25 = ssub.s32 %s19, 2
      %s26 = sadd.s32 %s19, 1
      %s28 = sadd.s32 %s27, 1
      %p31 = scmp.eq.s32.totalorder %s19, 1
      %p32 = scmp.ne.s32.totalorder %s27, %s29
      %p33 = scmp.eq.s32.totalorder %s19, 0
      %p34 = por %p32, %p33
      %p35 = scmp.ne.s32.totalorder %s27, %s29
      %p36 = scmp.eq.s32.totalorder %s24, 1
      %p37 = por %p35, %p36
      %p38 = scmp.ne.s32.totalorder %s29, %s30
      %p39 = scmp.eq.s32.totalorder %s24, 0
      %p40 = por %p38, %p39
      %p41 = scmp.ne.s32.totalorder %s29, %s30
      %p42 = scmp.eq.s32.totalorder %s25, 1
      %p43 = por %p41, %p42
      %p45 = scmp.ne.s32.totalorder %s30, %s44
      %p46 = scmp.eq.s32.totalorder %s25, 0
      %p47 = por %p45, %p46
      %s49 = sadd.s32 %s48, 1
      %p52 = scmp.eq.s32.totalorder %s19, 1
      %p53 = scmp.ne.s32.totalorder %s48, %s50
      %p54 = scmp.eq.s32.totalorder %s19, 0
      %p55 = por %p53, %p54
      %p56 = scmp.ne.s32.totalorder %s48, %s50
      %p57 = scmp.eq.s32.totalorder %s24, 1
      %p58 = por %p56, %p57
      %p59 = scmp.ne.s32.totalorder %s50, %s51
      %p60 = scmp.eq.s32.totalorder %s24, 0
      %p61 = por %p59, %p60
      %p62 = scmp.ne.s32.totalorder %s50, %s51
      %p63 = scmp.eq.s32.totalorder %s25, 1
      %p64 = por %p62, %p63
      %p66 = scmp.ne.s32.totalorder %s51, %s65
      %p67 = scmp.eq.s32.totalorder %s25, 0
      %p68 = por %p66, %p67
      %s70 = sadd.s32 %s69, 1
      %p73 = scmp.eq.s32.totalorder %s19, 1
      %p74 = scmp.ne.s32.totalorder %s69, %s71
      %p75 = scmp.eq.s32.totalorder %s19, 0
      %p76 = por %p74, %p75
      %p77 = scmp.ne.s32.totalorder %s69, %s71
      %p78 = scmp.eq.s32.totalorder %s24, 1
      %p79 = por %p77, %p78
      %p80 = scmp.ne.s32.totalorder %s71, %s72
      %p81 = scmp.eq.s32.totalorder %s24, 0
      %p82 = por %p80, %p81
      %p83 = scmp.ne.s32.totalorder %s71, %s72
      %p84 = scmp.eq.s32.totalorder %s25, 1
      %p85 = por %p83, %p84
      %p87 = scmp.ne.s32.totalorder %s72, %s86
      %p88 = scmp.eq.s32.totalorder %s25, 0
      %p89 = por %p87, %p88
      %s90 = ssub.s32 %s19, %s26
      %p91 = scmp.eq.s32.totalorder %s90, 0
      %s93 = sadd.s32 %s92, 1
      %s94 = scalar_select %p91, %s92, %s93
      %p97 = pneg %p91
      %p98 = scmp.eq.s32.totalorder %s19, 1
      %p99 = por %p97, %p98
      %p100 = scmp.ne.s32.totalorder %s92, %s95
      %p101 = scmp.eq.s32.totalorder %s19, 0
      %p102 = por %p100, %p101
      %p103 = scmp.ne.s32.totalorder %s92, %s95
      %p104 = scmp.eq.s32.totalorder %s24, 1
      %p105 = por %p103, %p104
      %p106 = scmp.ne.s32.totalorder %s95, %s96
      %p107 = scmp.eq.s32.totalorder %s24, 0
      %p108 = por %p106, %p107
      %p109 = scmp.ne.s32.totalorder %s95, %s96
      %p110 = scmp.eq.s32.totalorder %s25, 1
      %p111 = por %p109, %p110
      %p113 = scmp.ne.s32.totalorder %s96, %s112
      %p114 = scmp.eq.s32.totalorder %s25, 0
      %p115 = por %p113, %p114
      %s116 = ssub.s32 %s19, %s26
      %p117 = scmp.eq.s32.totalorder %s116, 0
      %s119 = sadd.s32 %s118, 1
      %s120 = scalar_select %p117, %s118, %s119
      %p123 = pneg %p117
      %p124 = scmp.eq.s32.totalorder %s19, 1
      %p125 = por %p123, %p124
      %p126 = scmp.ne.s32.totalorder %s118, %s121
      %p127 = scmp.eq.s32.totalorder %s19, 0
      %p128 = por %p126, %p127
      %p129 = scmp.ne.s32.totalorder %s118, %s121
      %p130 = scmp.eq.s32.totalorder %s24, 1
      %p131 = por %p129, %p130
      %p132 = scmp.ne.s32.totalorder %s121, %s122
      %p133 = scmp.eq.s32.totalorder %s24, 0
      %p134 = por %p132, %p133
      %p135 = scmp.ne.s32.totalorder %s121, %s122
      %p136 = scmp.eq.s32.totalorder %s25, 1
      %p137 = por %p135, %p136
      %p139 = scmp.ne.s32.totalorder %s122, %s138
      %p140 = scmp.eq.s32.totalorder %s25, 0
      %p141 = por %p139, %p140
      %s142 = ssub.s32 %s19, %s26
      %p143 = scmp.eq.s32.totalorder %s142, 0
      %s145 = sadd.s32 %s144, 1
      %s146 = scalar_select %p143, %s144, %s145
      %p149 = pneg %p143
      %p150 = scmp.eq.s32.totalorder %s19, 1
      %p151 = por %p149, %p150
      %p152 = scmp.ne.s32.totalorder %s144, %s147
      %p153 = scmp.eq.s32.totalorder %s19, 0
      %p154 = por %p152, %p153
      %p155 = scmp.ne.s32.totalorder %s144, %s147
      %p156 = scmp.eq.s32.totalorder %s24, 1
      %p157 = por %p155, %p156
      %p158 = scmp.ne.s32.totalorder %s147, %s148
      %p159 = scmp.eq.s32.totalorder %s24, 0
      %p160 = por %p158, %p159
      %p161 = scmp.ne.s32.totalorder %s147, %s148
      %p162 = scmp.eq.s32.totalorder %s25, 1
      %p163 = por %p161, %p162
      %p165 = scmp.ne.s32.totalorder %s148, %s164
      %p166 = scmp.eq.s32.totalorder %s25, 0
      %p167 = por %p165, %p166
      %p168 = scmp.le.s32.totalorder 1, %s19
      %p169 = scmp.lt.s32.totalorder %s19, 3
      %p170 = pnand %p168, %p169
      %p171 = pneg %p170
      // Predicated region
      $region9: #{tpu_custom_call.1} parent=5 // pred_check
        _
      $region10: #{tpu_custom_call.1} parent=5 // pred_check_branch
        %173 = sbr.rel (%p170) target = $region12
      $region11: #{tpu_custom_call.1} parent=5 // pred_region
        %s174 = ssub.s32 %s19, 1
        // Predicated region
        $region13: #{tpu_custom_call.1} parent=11 // pred_check
          %p175 = pneg %p40
        $region14: #{tpu_custom_call.1} parent=11 // pred_check_branch
          %177 = sbr.rel (%p175) target = $region16
        $region15: #{tpu_custom_call.1} parent=11 // pred_region
          %s179 = ssub.s32 64, 64
          %180 = vsyncadd [#allocation5], %s179
          %s182 = sshll.u32 [#allocation4], 4
          %s183 = int_to_ptr.vmem [resolvable:$true] %s182
          %185 = dma.hbm_to_vmem [thread:$0]  %s0, 64, %s183, [#allocation5]
        $region16: #{tpu_custom_call.1} parent=11 // pred_fallthru
          _
        // Predicated region
        $region17: #{tpu_custom_call.1} parent=11 // pred_check
          %p186 = pneg %p61
        $region18: #{tpu_custom_call.1} parent=11 // pred_check_branch
          %188 = sbr.rel (%p186) target = $region20
        $region19: #{tpu_custom_call.1} parent=11 // pred_region
          %s190 = ssub.s32 4096, 4096
          %191 = vsyncadd [#allocation8], %s190
          %s192 = sshll.u32 [#allocation7], 4
          %s193 = int_to_ptr.vmem [resolvable:$true] %s192
          %198 = dma.hbm_to_vmem [thread:$0]  %s1, 4096, %s193, [#allocation8], 256, 256, 16
        $region20: #{tpu_custom_call.1} parent=11 // pred_fallthru
          _
        // Predicated region
        $region21: #{tpu_custom_call.1} parent=11 // pred_check
          %p199 = pneg %p82
        $region22: #{tpu_custom_call.1} parent=11 // pred_check_branch
          %201 = sbr.rel (%p199) target = $region24
        $region23: #{tpu_custom_call.1} parent=11 // pred_region
          %s203 = ssub.s32 128, 128
          %204 = vsyncadd [#allocation8], %s203
          %s206 = sshll.u32 [#allocation9], 4
          %s207 = int_to_ptr.vmem [resolvable:$true] %s206
          %209 = dma.hbm_to_vmem [thread:$0]  %s2, 128, %s207, [#allocation8]
        $region24: #{tpu_custom_call.1} parent=11 // pred_fallthru
          _
      $region12: #{tpu_custom_call.1} parent=5 // pred_fallthru
        _
      %p210 = scmp.lt.s32.totalorder %s19, 2
      // Predicated region
      $region25: #{tpu_custom_call.1} parent=5 // pred_check
        %p211 = pneg %p210
      $region26: #{tpu_custom_call.1} parent=5 // pred_check_branch
        %213 = sbr.rel (%p211) target = $region28
      $region27: #{tpu_custom_call.1} parent=5 // pred_region
        // Predicated region
        $region29: #{tpu_custom_call.1} parent=27 // pred_check
          %p214 = pneg %p102
        $region30: #{tpu_custom_call.1} parent=27 // pred_check_branch
          %216 = sbr.rel (%p214) target = $region32
        $region31: #{tpu_custom_call.1} parent=27 // pred_region
          %s217 = sand.u32 %s92, 1
          %s218 = scalar_lea.sflag [#allocation11], %s217
          %s219 = sand.u32 %s92, 1
          %s220 = smul.addr %s219, 128
          %s221 = scalar_lea.vmem [#allocation10], %s220
          %s223 = ssub.s32 2048, 2048
          %224 = vsyncadd %s218, %s223
          %s225 = smul.addr %s19, 64
          %s226 = scalar_lea.hbm %s3, %s225
          %s227 = sshll.u32 %s221, 4
          %s228 = int_to_ptr.vmem [resolvable:$true] %s227
          %233 = dma.hbm_to_vmem [thread:$0]  %s226, 2048, %s228, %s218, 128, 64, 4
        $region32: #{tpu_custom_call.1} parent=27 // pred_fallthru
          _
        // Predicated region
        $region33: #{tpu_custom_call.1} parent=27 // pred_check
          %p234 = pneg %p128
        $region34: #{tpu_custom_call.1} parent=27 // pred_check_branch
          %236 = sbr.rel (%p234) target = $region36
        $region35: #{tpu_custom_call.1} parent=27 // pred_region
          %p237 = scmp.lt.s32.totalorder %s19, 1
          %s238 = scalar_select %p237, %s19, 1
          %s239 = smul.addr %s238, 2
          %s240 = scalar_lea.vmem %s4, %s239
        $region36: #{tpu_custom_call.1} parent=27 // pred_fallthru
          _
      $region28: #{tpu_custom_call.1} parent=5 // pred_fallthru
        _
      %p241 = scmp.le.s32.totalorder 1, %s19
      %p242 = scmp.lt.s32.totalorder %s19, 3
      %p243 = pnand %p241, %p242
      %p244 = pneg %p243
      // Predicated region
      $region37: #{tpu_custom_call.1} parent=5 // pred_check
        _
      $region38: #{tpu_custom_call.1} parent=5 // pred_check_branch
        %246 = sbr.rel (%p243) target = $region40
      $region39: #{tpu_custom_call.1} parent=5 // pred_region
        %s247 = ssub.s32 %s19, 1
        // Predicated region
        $region41: #{tpu_custom_call.1} parent=39 // pred_check
          %p248 = pneg %p40
        $region42: #{tpu_custom_call.1} parent=39 // pred_check_branch
          %250 = sbr.rel (%p248) target = $region44
        $region43: #{tpu_custom_call.1} parent=39 // pred_region
          %251 = dma.done [#allocation5], 64
        $region44: #{tpu_custom_call.1} parent=39 // pred_fallthru
          _
        // Predicated region
        $region45: #{tpu_custom_call.1} parent=39 // pred_check
          %p252 = pneg %p61
        $region46: #{tpu_custom_call.1} parent=39 // pred_check_branch
          %254 = sbr.rel (%p252) target = $region48
        $region47: #{tpu_custom_call.1} parent=39 // pred_region
          %255 = dma.done [#allocation8], 4096
        $region48: #{tpu_custom_call.1} parent=39 // pred_fallthru
          _
        // Predicated region
        $region49: #{tpu_custom_call.1} parent=39 // pred_check
          %p256 = pneg %p82
        $region50: #{tpu_custom_call.1} parent=39 // pred_check_branch
          %258 = sbr.rel (%p256) target = $region52
        $region51: #{tpu_custom_call.1} parent=39 // pred_region
          %259 = dma.done [#allocation8], 128
        $region52: #{tpu_custom_call.1} parent=39 // pred_fallthru
          _
        %s260 = sand.u32 %s95, 1
        %s261 = scalar_lea.sflag [#allocation11], %s260
        %s262 = sand.u32 %s95, 1
        %s263 = smul.addr %s262, 128
        %s264 = scalar_lea.vmem [#allocation10], %s263
        // Predicated region
        $region53: #{tpu_custom_call.1} parent=39 // pred_check
          %p265 = pneg %p108
        $region54: #{tpu_custom_call.1} parent=39 // pred_check_branch
          %267 = sbr.rel (%p265) target = $region56
        $region55: #{tpu_custom_call.1} parent=39 // pred_region
          %268 = dma.done %s261, 2048
        $region56: #{tpu_custom_call.1} parent=39 // pred_fallthru
          _
        %p269 = pneg %p40
        %p270 = pneg %p37
        %p271 = pneg %p61
        %p272 = pneg %p58
        %p273 = pneg %p82
        %p274 = pneg %p79
        %s275 = sand.u32 %s95, 1
        %s276 = scalar_lea.sflag [#allocation11], %s275
        %s277 = sand.u32 %s95, 1
        %s278 = smul.addr %s277, 128
        %s279 = scalar_lea.vmem [#allocation10], %s278
        %p280 = pneg %p108
        %p281 = pneg %p105
        %p282 = scmp.lt.s32.totalorder %s24, 1
        %s283 = scalar_select %p282, %s24, 1
        %s284 = smul.addr %s283, 2
        %s285 = scalar_lea.vmem %s4, %s284
        %p286 = pneg %p134
        %p287 = pneg %p131
        %p288 = pneg %p160
        %p289 = pneg %p157
        %s290 = sand.u32 %s147, 1
        %s291 = scalar_lea.sflag [#allocation6], %s290
        %s292 = sand.u32 %s147, 1
        %s293 = smul.addr %s292, 8
        %s294 = scalar_lea.vmem [#allocation12], %s293
        %p295 = scmp.lt.s32.totalorder %s24, 1
        %s296 = scalar_select %p295, %s24, 1
        %s297 = smul.addr %s296, 2
        %s298 = scalar_lea.vmem %s4, %s297
        %p300 = scmp.eq.s32.totalorder %s24, 0
        // Predicated region
        $region57: #{tpu_custom_call.1} parent=39 // pred_check
          %p301 = pneg %p300
        $region58: #{tpu_custom_call.1} parent=39 // pred_check_branch
          %303 = sbr.rel (%p301) target = $region60
        $region59: #{tpu_custom_call.1} parent=39 // pred_region
          %v304 = vld [vmem:[#allocation4] sm:$0xf]
          %v305 = vld [vmem:[#allocation7] sm:$0xff]
          %v306 = vld [vmem:[#allocation7 + $0x8] sm:$0xff]
          %v307 = vld [vmem:[#allocation7 + $0x10] sm:$0xff]
          %v308 = vld [vmem:[#allocation7 + $0x18] sm:$0xff]
          %v309 = vld [vmem:[#allocation7 + $0x20] sm:$0xff]
          %v310 = vld [vmem:[#allocation7 + $0x28] sm:$0xff]
          %v311 = vld [vmem:[#allocation7 + $0x30] sm:$0xff]
          %v312 = vld [vmem:[#allocation7 + $0x38] sm:$0xff]
          %v313 = vld [vmem:[#allocation7 + $0x40] sm:$0xff]
          %v314 = vld [vmem:[#allocation7 + $0x48] sm:$0xff]
          %v315 = vld [vmem:[#allocation7 + $0x50] sm:$0xff]
          %v316 = vld [vmem:[#allocation7 + $0x58] sm:$0xff]
          %v317 = vld [vmem:[#allocation7 + $0x60] sm:$0xff]
          %v318 = vld [vmem:[#allocation7 + $0x68] sm:$0xff]
          %v319 = vld [vmem:[#allocation7 + $0x70] sm:$0xff]
          %v320 = vld [vmem:[#allocation7 + $0x78] sm:$0xff]
          %v321 = vld [vmem:[#allocation7 + $0x80] sm:$0xff]
          %v322 = vld [vmem:[#allocation7 + $0x88] sm:$0xff]
          %v323 = vld [vmem:[#allocation7 + $0x90] sm:$0xff]
          %v324 = vld [vmem:[#allocation7 + $0x98] sm:$0xff]
          %v325 = vld [vmem:[#allocation7 + $0xa0] sm:$0xff]
          %v326 = vld [vmem:[#allocation7 + $0xa8] sm:$0xff]
          %v327 = vld [vmem:[#allocation7 + $0xb0] sm:$0xff]
          %v328 = vld [vmem:[#allocation7 + $0xb8] sm:$0xff]
          %v329 = vld [vmem:[#allocation7 + $0xc0] sm:$0xff]
          %v330 = vld [vmem:[#allocation7 + $0xc8] sm:$0xff]
          %v331 = vld [vmem:[#allocation7 + $0xd0] sm:$0xff]
          %v332 = vld [vmem:[#allocation7 + $0xd8] sm:$0xff]
          %v333 = vld [vmem:[#allocation7 + $0xe0] sm:$0xff]
          %v334 = vld [vmem:[#allocation7 + $0xe8] sm:$0xff]
          %v335 = vld [vmem:[#allocation7 + $0xf0] sm:$0xff]
          %v336 = vld [vmem:[#allocation7 + $0xf8] sm:$0xff]
          %v369 = vunpack.c.l.b16 %v305
          %v370 = vunpack.c.h.b16 %v305
          %v371 = vunpack.c.l.b16 %v306
          %v372 = vunpack.c.h.b16 %v306
          %v373 = vunpack.c.l.b16 %v307
          %v374 = vunpack.c.h.b16 %v307
          %v375 = vunpack.c.l.b16 %v308
          %v376 = vunpack.c.h.b16 %v308
          %v377 = vunpack.c.l.b16 %v309
          %v378 = vunpack.c.h.b16 %v309
          %v379 = vunpack.c.l.b16 %v310
          %v380 = vunpack.c.h.b16 %v310
          %v381 = vunpack.c.l.b16 %v311
          %v382 = vunpack.c.h.b16 %v311
          %v383 = vunpack.c.l.b16 %v312
          %v384 = vunpack.c.h.b16 %v312
          %v385 = vunpack.c.l.b16 %v313
          %v386 = vunpack.c.h.b16 %v313
          %v387 = vunpack.c.l.b16 %v314
          %v388 = vunpack.c.h.b16 %v314
          %v389 = vunpack.c.l.b16 %v315
          %v390 = vunpack.c.h.b16 %v315
          %v391 = vunpack.c.l.b16 %v316
          %v392 = vunpack.c.h.b16 %v316
          %v393 = vunpack.c.l.b16 %v317
          %v394 = vunpack.c.h.b16 %v317
          %v395 = vunpack.c.l.b16 %v318
          %v396 = vunpack.c.h.b16 %v318
          %v397 = vunpack.c.l.b16 %v319
          %v398 = vunpack.c.h.b16 %v319
          %v399 = vunpack.c.l.b16 %v320
          %v400 = vunpack.c.h.b16 %v320
          %v401 = vunpack.c.l.b16 %v321
          %v402 = vunpack.c.h.b16 %v321
          %v403 = vunpack.c.l.b16 %v322
          %v404 = vunpack.c.h.b16 %v322
          %v405 = vunpack.c.l.b16 %v323
          %v406 = vunpack.c.h.b16 %v323
          %v407 = vunpack.c.l.b16 %v324
          %v408 = vunpack.c.h.b16 %v324
          %v409 = vunpack.c.l.b16 %v325
          %v410 = vunpack.c.h.b16 %v325
          %v411 = vunpack.c.l.b16 %v326
          %v412 = vunpack.c.h.b16 %v326
          %v413 = vunpack.c.l.b16 %v327
          %v414 = vunpack.c.h.b16 %v327
          %v415 = vunpack.c.l.b16 %v328
          %v416 = vunpack.c.h.b16 %v328
          %v417 = vunpack.c.l.b16 %v329
          %v418 = vunpack.c.h.b16 %v329
          %v419 = vunpack.c.l.b16 %v330
          %v420 = vunpack.c.h.b16 %v330
          %v421 = vunpack.c.l.b16 %v331
          %v422 = vunpack.c.h.b16 %v331
          %v423 = vunpack.c.l.b16 %v332
          %v424 = vunpack.c.h.b16 %v332
          %v425 = vunpack.c.l.b16 %v333
          %v426 = vunpack.c.h.b16 %v333
          %v427 = vunpack.c.l.b16 %v334
          %v428 = vunpack.c.h.b16 %v334
          %v429 = vunpack.c.l.b16 %v335
          %v430 = vunpack.c.h.b16 %v335
          %v431 = vunpack.c.l.b16 %v336
          %v432 = vunpack.c.h.b16 %v336
          %v433 = vpack.c.b16 %v373, %v369
          %v434 = vpack.c.b16 %v374, %v370
          %v435 = vpack.c.b16 %v375, %v371
          %v436 = vpack.c.b16 %v376, %v372
          %v437 = vpack.c.b16 %v381, %v377
          %v438 = vpack.c.b16 %v382, %v378
          %v439 = vpack.c.b16 %v383, %v379
          %v440 = vpack.c.b16 %v384, %v380
          %v441 = vpack.c.b16 %v389, %v385
          %v442 = vpack.c.b16 %v390, %v386
          %v443 = vpack.c.b16 %v391, %v387
          %v444 = vpack.c.b16 %v392, %v388
          %v445 = vpack.c.b16 %v397, %v393
          %v446 = vpack.c.b16 %v398, %v394
          %v447 = vpack.c.b16 %v399, %v395
          %v448 = vpack.c.b16 %v400, %v396
          %v449 = vpack.c.b16 %v405, %v401
          %v450 = vpack.c.b16 %v406, %v402
          %v451 = vpack.c.b16 %v407, %v403
          %v452 = vpack.c.b16 %v408, %v404
          %v453 = vpack.c.b16 %v413, %v409
          %v454 = vpack.c.b16 %v414, %v410
          %v455 = vpack.c.b16 %v415, %v411
          %v456 = vpack.c.b16 %v416, %v412
          %v457 = vpack.c.b16 %v421, %v417
          %v458 = vpack.c.b16 %v422, %v418
          %v459 = vpack.c.b16 %v423, %v419
          %v460 = vpack.c.b16 %v424, %v420
          %v461 = vpack.c.b16 %v429, %v425
          %v462 = vpack.c.b16 %v430, %v426
          %v463 = vpack.c.b16 %v431, %v427
          %v464 = vpack.c.b16 %v432, %v428
          %497 = vmatprep.subr.bf16.mxu0 %v434
          %498 = vmatpush1.bf16.msra.mxu0 %v433
          %499 = vmatprep.subr.bf16.mxu0 %v438
          %500 = vmatpush1.bf16.msra.mxu0 %v437
          %501 = vmatprep.subr.bf16.mxu0 %v442
          %502 = vmatpush1.bf16.msra.mxu0 %v441
          %503 = vmatprep.subr.bf16.mxu0 %v446
          %504 = vmatpush1.bf16.msra.mxu0 %v445
          %505 = vmatprep.subr.bf16.mxu0 %v450
          %506 = vmatpush1.bf16.msra.mxu0 %v449
          %507 = vmatprep.subr.bf16.mxu0 %v454
          %508 = vmatpush1.bf16.msra.mxu0 %v453
          %509 = vmatprep.subr.bf16.mxu0 %v458
          %510 = vmatpush1.bf16.msra.mxu0 %v457
          %511 = vmatprep.subr.bf16.mxu0 %v462
          %512 = vmatpush1.bf16.msra.mxu0 %v461
          %513 = vmatprep.subr.bf16.mxu0 0
          %514 = vmatpush1.bf16.msra.mxu0 0
          %515 = vmatprep.subr.bf16.mxu0 0
          %516 = vmatpush1.bf16.msra.mxu0 0
          %517 = vmatprep.subr.bf16.mxu0 0
          %518 = vmatpush1.bf16.msra.mxu0 0
          %519 = vmatprep.subr.bf16.mxu0 0
          %520 = vmatpush1.bf16.msra.mxu0 0
          %521 = vmatprep.subr.bf16.mxu0 0
          %522 = vmatpush1.bf16.msra.mxu0 0
          %523 = vmatprep.subr.bf16.mxu0 0
          %524 = vmatpush1.bf16.msra.mxu0 0
          %525 = vmatprep.subr.bf16.mxu0 0
          %526 = vmatpush1.bf16.msra.mxu0 0
          %527 = vmatprep.subr.bf16.mxu0 0
          %528 = vmatpush1.bf16.msra.mxu0 0
          %529 = vmatprep.mubr.bf16.mxu0 0
          %530 = vmatmul.mubr.bf16.gmra.mrb[0].mxu0 %v304
          %v531 = vpop.f32.mrb[0].mxu0
          %v532 = vadd.f32 0.0, %v531
          %v533 = vpop.f32.mrb[0].mxu0
          %v534 = vadd.f32 0.0, %v533
          %v535 = vpop.f32.mrb[0].mxu0
          %v536 = vpop.f32.mrb[0].mxu0
          %537 = vdwg.mxu0
          %538 = vmatprep.subr.bf16.mxu0 %v436
          %539 = vmatpush1.bf16.msra.mxu0 %v435
          %540 = vmatprep.subr.bf16.mxu0 %v440
          %541 = vmatpush1.bf16.msra.mxu0 %v439
          %542 = vmatprep.subr.bf16.mxu0 %v444
          %543 = vmatpush1.bf16.msra.mxu0 %v443
          %544 = vmatprep.subr.bf16.mxu0 %v448
          %545 = vmatpush1.bf16.msra.mxu0 %v447
          %546 = vmatprep.subr.bf16.mxu0 %v452
          %547 = vmatpush1.bf16.msra.mxu0 %v451
          %548 = vmatprep.subr.bf16.mxu0 %v456
          %549 = vmatpush1.bf16.msra.mxu0 %v455
          %550 = vmatprep.subr.bf16.mxu0 %v460
          %551 = vmatpush1.bf16.msra.mxu0 %v459
          %552 = vmatprep.subr.bf16.mxu0 %v464
          %553 = vmatpush1.bf16.msra.mxu0 %v463
          %554 = vmatprep.subr.bf16.mxu0 0
          %555 = vmatpush1.bf16.msra.mxu0 0
          %556 = vmatprep.subr.bf16.mxu0 0
          %557 = vmatpush1.bf16.msra.mxu0 0
          %558 = vmatprep.subr.bf16.mxu0 0
          %559 = vmatpush1.bf16.msra.mxu0 0
          %560 = vmatprep.subr.bf16.mxu0 0
          %561 = vmatpush1.bf16.msra.mxu0 0
          %562 = vmatprep.subr.bf16.mxu0 0
          %563 = vmatpush1.bf16.msra.mxu0 0
          %564 = vmatprep.subr.bf16.mxu0 0
          %565 = vmatpush1.bf16.msra.mxu0 0
          %566 = vmatprep.subr.bf16.mxu0 0
          %567 = vmatpush1.bf16.msra.mxu0 0
          %568 = vmatprep.subr.bf16.mxu0 0
          %569 = vmatpush1.bf16.msra.mxu0 0
          %570 = vmatprep.mubr.bf16.mxu0 0
          %571 = vmatmul.mubr.bf16.gmra.mrb[0].mxu0 %v304
          %v572 = vpop.f32.mrb[0].mxu0
          %v573 = vadd.f32 0.0, %v572
          %v574 = vpop.f32.mrb[0].mxu0
          %v575 = vadd.f32 0.0, %v574
          %v576 = vpop.f32.mrb[0].mxu0
          %v577 = vpop.f32.mrb[0].mxu0
          %578 = vdwg.mxu0
          %v579 = vrot.slane %v532, 4
          %v580 = vadd.f32 %v532, %v579
          %v581 = vrot.slane %v580, 2
          %v582 = vadd.f32 %v580, %v581
          %v583 = vrot.slane %v582, 1
          %v584 = vadd.f32 %v582, %v583
          %v585 = vrot.slane %v534, 4
          %v586 = vadd.f32 %v534, %v585
          %v587 = vrot.slane %v586, 2
          %v588 = vadd.f32 %v586, %v587
          %v589 = vrot.slane %v588, 1
          %v590 = vadd.f32 %v588, %v589
          %v591 = vrot.slane %v573, 4
          %v592 = vadd.f32 %v573, %v591
          %v593 = vrot.slane %v592, 2
          %v594 = vadd.f32 %v592, %v593
          %v595 = vrot.slane %v594, 1
          %v596 = vadd.f32 %v594, %v595
          %v597 = vrot.slane %v575, 4
          %v598 = vadd.f32 %v575, %v597
          %v599 = vrot.slane %v598, 2
          %v600 = vadd.f32 %v598, %v599
          %v601 = vrot.slane %v600, 1
          %v602 = vadd.f32 %v600, %v601
          %v603 = vrcp.pop 8.0
          %v604 = vmul.f32 %v584, %v603
          %v605 = vmul.f32 %v590, %v603
          %v606 = vmul.f32 %v596, %v603
          %v607 = vmul.f32 %v602, %v603
          %v608 = vsub.f32 %v532, %v604
          %v609 = vsub.f32 %v534, %v605
          %v610 = vsub.f32 %v573, %v606
          %v611 = vsub.f32 %v575, %v607
          %v612 = vmul.f32 %v608, %v608
          %v613 = vmul.f32 %v609, %v609
          %v614 = vmul.f32 %v610, %v610
          %v615 = vmul.f32 %v611, %v611
          %v616 = vrot.slane %v612, 4
          %v617 = vadd.f32 %v612, %v616
          %v618 = vrot.slane %v617, 2
          %v619 = vadd.f32 %v617, %v618
          %v620 = vrot.slane %v619, 1
          %v621 = vadd.f32 %v619, %v620
          %v622 = vrot.slane %v613, 4
          %v623 = vadd.f32 %v613, %v622
          %v624 = vrot.slane %v623, 2
          %v625 = vadd.f32 %v623, %v624
          %v626 = vrot.slane %v625, 1
          %v627 = vadd.f32 %v625, %v626
          %v628 = vrot.slane %v614, 4
          %v629 = vadd.f32 %v614, %v628
          %v630 = vrot.slane %v629, 2
          %v631 = vadd.f32 %v629, %v630
          %v632 = vrot.slane %v631, 1
          %v633 = vadd.f32 %v631, %v632
          %v634 = vrot.slane %v615, 4
          %v635 = vadd.f32 %v615, %v634
          %v636 = vrot.slane %v635, 2
          %v637 = vadd.f32 %v635, %v636
          %v638 = vrot.slane %v637, 1
          %v639 = vadd.f32 %v637, %v638
          %v640 = vmul.f32 %v621, %v603
          %v641 = vmul.f32 %v627, %v603
          %v642 = vmul.f32 %v633, %v603
          %v643 = vmul.f32 %v639, %v603
          %v644 = vld [vmem:[#allocation9] sm:$0xff]
          %v645 = vadd.f32 %v640, 1e-05
          %v646 = vadd.f32 %v641, 1e-05
          %v647 = vadd.f32 %v642, 1e-05
          %v648 = vadd.f32 %v643, 1e-05
          %v649 = vrsqrt.pop %v645
          %v650 = vrsqrt.pop %v646
          %v651 = vrsqrt.pop %v647
          %v652 = vrsqrt.pop %v648
          %v657 = vcombine.low %v649, %v650
          %v658 = vcombine.low %v651, %v652
          %v660 = vunpack.c.l.s4 1983009808
          %v661 = vunpack.c.0.s8 %v660
          %v662 = vlaneseq
          %v663 = vshrl.u32 %v662, 7
          %v664 = vsub.s32 %v661, %v663
          %v665 = vrot.slane %v657, %v664
          %v667 = vunpack.c.l.s4 1983009808
          %v668 = vunpack.c.0.s8 %v667
          %v669 = vlaneseq
          %v670 = vshrl.u32 %v669, 7
          %v671 = vsub.s32 %v668, %v670
          %v672 = vrot.slane %v658, %v671
          %v673 = vcombine.low %v665, %v672
          %v675 = vmul.f32 %v644, %v673
          %v677 = vlaneseq
          %v678 = vshrl.u32 %v677, 7
          %v679 = vsub.s32 0, %v678
          %v680 = vrot.slane %v675, %v679
          %v681 = vlaneseq
          %v682 = vshrl.u32 %v681, 7
          %v683 = vsub.s32 2, %v682
          %v684 = vrot.slane %v675, %v683
          %v685 = vlaneseq
          %v686 = vshrl.u32 %v685, 7
          %v687 = vsub.s32 4, %v686
          %v688 = vrot.slane %v675, %v687
          %v689 = vlaneseq
          %v690 = vshrl.u32 %v689, 7
          %v691 = vsub.s32 6, %v690
          %v692 = vrot.slane %v675, %v691
          %v697 = vlaneseq
          %v698 = vshrl.u32 %v697, 7
          %v699 = vsub.s32 0, %v698
          %v700 = vrot.slane %v680, %v699
          %v701 = vlaneseq
          %v702 = vshrl.u32 %v701, 7
          %v703 = vsub.s32 0, %v702
          %v704 = vrot.slane %v684, %v703
          %v705 = vlaneseq
          %v706 = vshrl.u32 %v705, 7
          %v707 = vsub.s32 0, %v706
          %v708 = vrot.slane %v688, %v707
          %v709 = vlaneseq
          %v710 = vshrl.u32 %v709, 7
          %v711 = vsub.s32 0, %v710
          %v712 = vrot.slane %v692, %v711
          %v713 = vmul.f32 %v608, %v700
          %v714 = vmul.f32 %v609, %v704
          %v715 = vmul.f32 %v610, %v708
          %v716 = vmul.f32 %v611, %v712
          %v718 = vlaneseq
          %v719 = vshrl.u32 %v718, 7
          %v720 = vsub.s32 1, %v719
          %v721 = vrot.slane %v644, %v720
          %v722 = vlaneseq
          %v723 = vshrl.u32 %v722, 7
          %v724 = vsub.s32 3, %v723
          %v725 = vrot.slane %v644, %v724
          %v726 = vlaneseq
          %v727 = vshrl.u32 %v726, 7
          %v728 = vsub.s32 5, %v727
          %v729 = vrot.slane %v644, %v728
          %v730 = vlaneseq
          %v731 = vshrl.u32 %v730, 7
          %v732 = vsub.s32 7, %v731
          %v733 = vrot.slane %v644, %v732
          %v738 = vlaneseq
          %v739 = vshrl.u32 %v738, 7
          %v740 = vsub.s32 1, %v739
          %v741 = vrot.slane %v721, %v740
          %v742 = vlaneseq
          %v743 = vshrl.u32 %v742, 7
          %v744 = vsub.s32 1, %v743
          %v745 = vrot.slane %v725, %v744
          %v746 = vlaneseq
          %v747 = vshrl.u32 %v746, 7
          %v748 = vsub.s32 1, %v747
          %v749 = vrot.slane %v729, %v748
          %v750 = vlaneseq
          %v751 = vshrl.u32 %v750, 7
          %v752 = vsub.s32 1, %v751
          %v753 = vrot.slane %v733, %v752
          %v754 = vadd.f32 %v713, %v741
          %v755 = vadd.f32 %v714, %v745
          %v756 = vadd.f32 %v715, %v749
          %v757 = vadd.f32 %v716, %v753
          %v758 = vmax.f32 %v754, 0.0
          %v759 = vmax.f32 %v755, 0.0
          %v760 = vpack.c.bf16 %v758, %v758
          %v761 = vpack.c.bf16 %v759, %v759
          %v764 = vunpack.c.l.b16 %v760
          %v765 = vunpack.c.l.b16 %v761
          %v766 = vpack.c.b16 %v765, %v764
          %768 = vst [vmem:[#allocation2] sm:$0xff] %v766
          %769 = vst [vmem:[#allocation3] sm:$0xff] %v756
          %770 = vst [vmem:[#allocation3 + $0x8] sm:$0xff] %v757
        $region60: #{tpu_custom_call.1} parent=39 // pred_fallthru
          _
        %v771 = vld [vmem:[#allocation2] sm:$0xff]
        %v772 = vld [vmem:[%s264] sm:$0xf]
        %v773 = vld [vmem:[%s264 + $0x4] sm:$0xf]
        %v774 = vld [vmem:[%s264 + $0x8] sm:$0xf]
        %v775 = vld [vmem:[%s264 + $0xc] sm:$0xf]
        %v776 = vld [vmem:[%s264 + $0x10] sm:$0xf]
        %v777 = vld [vmem:[%s264 + $0x14] sm:$0xf]
        %v778 = vld [vmem:[%s264 + $0x18] sm:$0xf]
        %v779 = vld [vmem:[%s264 + $0x1c] sm:$0xf]
        %v780 = vld [vmem:[%s264 + $0x20] sm:$0xf]
        %v781 = vld [vmem:[%s264 + $0x24] sm:$0xf]
        %v782 = vld [vmem:[%s264 + $0x28] sm:$0xf]
        %v783 = vld [vmem:[%s264 + $0x2c] sm:$0xf]
        %v784 = vld [vmem:[%s264 + $0x30] sm:$0xf]
        %v785 = vld [vmem:[%s264 + $0x34] sm:$0xf]
        %v786 = vld [vmem:[%s264 + $0x38] sm:$0xf]
        %v787 = vld [vmem:[%s264 + $0x3c] sm:$0xf]
        %v788 = vld [vmem:[%s264 + $0x40] sm:$0xf]
        %v789 = vld [vmem:[%s264 + $0x44] sm:$0xf]
        %v790 = vld [vmem:[%s264 + $0x48] sm:$0xf]
        %v791 = vld [vmem:[%s264 + $0x4c] sm:$0xf]
        %v792 = vld [vmem:[%s264 + $0x50] sm:$0xf]
        %v793 = vld [vmem:[%s264 + $0x54] sm:$0xf]
        %v794 = vld [vmem:[%s264 + $0x58] sm:$0xf]
        %v795 = vld [vmem:[%s264 + $0x5c] sm:$0xf]
        %v796 = vld [vmem:[%s264 + $0x60] sm:$0xf]
        %v797 = vld [vmem:[%s264 + $0x64] sm:$0xf]
        %v798 = vld [vmem:[%s264 + $0x68] sm:$0xf]
        %v799 = vld [vmem:[%s264 + $0x6c] sm:$0xf]
        %v800 = vld [vmem:[%s264 + $0x70] sm:$0xf]
        %v801 = vld [vmem:[%s264 + $0x74] sm:$0xf]
        %v802 = vld [vmem:[%s264 + $0x78] sm:$0xf]
        %v803 = vld [vmem:[%s264 + $0x7c] sm:$0xf]
        %v805 = vunpack.c.l.b16 %v771
        %v806 = vunpack.c.h.b16 %v771
        %v807 = vpack.c.b16 %v805, %v805
        %v808 = vpack.c.b16 %v806, %v806
        %v843 = vunpack.c.l.b16 %v772
        %v844 = vunpack.c.l.b16 %v773
        %v845 = vunpack.c.l.b16 %v774
        %v846 = vunpack.c.l.b16 %v775
        %v847 = vunpack.c.l.b16 %v776
        %v848 = vunpack.c.l.b16 %v777
        %v849 = vunpack.c.l.b16 %v778
        %v850 = vunpack.c.l.b16 %v779
        %v851 = vunpack.c.l.b16 %v780
        %v852 = vunpack.c.l.b16 %v781
        %v853 = vunpack.c.l.b16 %v782
        %v854 = vunpack.c.l.b16 %v783
        %v855 = vunpack.c.l.b16 %v784
        %v856 = vunpack.c.l.b16 %v785
        %v857 = vunpack.c.l.b16 %v786
        %v858 = vunpack.c.l.b16 %v787
        %v859 = vunpack.c.l.b16 %v788
        %v860 = vunpack.c.l.b16 %v789
        %v861 = vunpack.c.l.b16 %v790
        %v862 = vunpack.c.l.b16 %v791
        %v863 = vunpack.c.l.b16 %v792
        %v864 = vunpack.c.l.b16 %v793
        %v865 = vunpack.c.l.b16 %v794
        %v866 = vunpack.c.l.b16 %v795
        %v867 = vunpack.c.l.b16 %v796
        %v868 = vunpack.c.l.b16 %v797
        %v869 = vunpack.c.l.b16 %v798
        %v870 = vunpack.c.l.b16 %v799
        %v871 = vunpack.c.l.b16 %v800
        %v872 = vunpack.c.l.b16 %v801
        %v873 = vunpack.c.l.b16 %v802
        %v874 = vunpack.c.l.b16 %v803
        %v875 = vpack.c.b16 %v844, %v843
        %v876 = vpack.c.b16 %v846, %v845
        %v877 = vpack.c.b16 %v848, %v847
        %v878 = vpack.c.b16 %v850, %v849
        %v879 = vpack.c.b16 %v852, %v851
        %v880 = vpack.c.b16 %v854, %v853
        %v881 = vpack.c.b16 %v856, %v855
        %v882 = vpack.c.b16 %v858, %v857
        %v883 = vpack.c.b16 %v860, %v859
        %v884 = vpack.c.b16 %v862, %v861
        %v885 = vpack.c.b16 %v864, %v863
        %v886 = vpack.c.b16 %v866, %v865
        %v887 = vpack.c.b16 %v868, %v867
        %v888 = vpack.c.b16 %v870, %v869
        %v889 = vpack.c.b16 %v872, %v871
        %v890 = vpack.c.b16 %v874, %v873
        %907 = vmatprep.subr.bf16.mxu0 0
        %908 = vmatpush1.bf16.msra.mxu0 %v875
        %909 = vmatprep.subr.bf16.mxu0 0
        %910 = vmatpush1.bf16.msra.mxu0 %v876
        %911 = vmatprep.subr.bf16.mxu0 0
        %912 = vmatpush1.bf16.msra.mxu0 %v877
        %913 = vmatprep.subr.bf16.mxu0 0
        %914 = vmatpush1.bf16.msra.mxu0 %v878
        %915 = vmatprep.subr.bf16.mxu0 0
        %916 = vmatpush1.bf16.msra.mxu0 %v879
        %917 = vmatprep.subr.bf16.mxu0 0
        %918 = vmatpush1.bf16.msra.mxu0 %v880
        %919 = vmatprep.subr.bf16.mxu0 0
        %920 = vmatpush1.bf16.msra.mxu0 %v881
        %921 = vmatprep.subr.bf16.mxu0 0
        %922 = vmatpush1.bf16.msra.mxu0 %v882
        %923 = vmatprep.subr.bf16.mxu0 0
        %924 = vmatpush1.bf16.msra.mxu0 %v883
        %925 = vmatprep.subr.bf16.mxu0 0
        %926 = vmatpush1.bf16.msra.mxu0 %v884
        %927 = vmatprep.subr.bf16.mxu0 0
        %928 = vmatpush1.bf16.msra.mxu0 %v885
        %929 = vmatprep.subr.bf16.mxu0 0
        %930 = vmatpush1.bf16.msra.mxu0 %v886
        %931 = vmatprep.subr.bf16.mxu0 0
        %932 = vmatpush1.bf16.msra.mxu0 %v887
        %933 = vmatprep.subr.bf16.mxu0 0
        %934 = vmatpush1.bf16.msra.mxu0 %v888
        %935 = vmatprep.subr.bf16.mxu0 0
        %936 = vmatpush1.bf16.msra.mxu0 %v889
        %937 = vmatprep.subr.bf16.mxu0 0
        %938 = vmatpush1.bf16.msra.mxu0 %v890
        %939 = vmatprep.mubr.bf16.mxu0 %v808
        %940 = vmatmul.mubr.bf16.gmra.mrb[0].mxu0 %v807
        %v941 = vpop.f32.mrb[0].mxu0
        %v942 = vadd.f32 0.0, %v941
        %v943 = vpop.f32.mrb[0].mxu0
        %v944 = vpop.f32.mrb[0].mxu0
        %v945 = vpop.f32.mrb[0].mxu0
        %946 = vdwg.mxu0
        %v947 = vrot.slane %v942, 4
        %v948 = vadd.f32 %v942, %v947
        %v949 = vrot.slane %v948, 2
        %v950 = vadd.f32 %v948, %v949
        %v951 = vrot.slane %v950, 1
        %v952 = vadd.f32 %v950, %v951
        %v953 = vrcp.pop 8.0
        %v954 = vmul.f32 %v952, %v953
        %v955 = vsub.f32 %v942, %v954
        %v956 = vmul.f32 %v955, %v955
        %v957 = vrot.slane %v956, 4
        %v958 = vadd.f32 %v956, %v957
        %v959 = vrot.slane %v958, 2
        %v960 = vadd.f32 %v958, %v959
        %v961 = vrot.slane %v960, 1
        %v962 = vadd.f32 %v960, %v961
        %v963 = vmul.f32 %v962, %v953
        %v964 = vld [vmem:[%s298] sm:$0x3]
        %v965 = vadd.f32 %v963, 1e-05
        %v966 = vrsqrt.pop %v965
        %v967 = vmul.f32 %v964, %v966
        %s968 = smul.u32 %s24, 128
        %s969 = sshra.s32 %s968, 7
        %s970 = sand.u32 %s968, 127
        %s971 = smul.addr %s969, 8
        %s972 = scalar_lea.vmem [#allocation3], %s971
        %v973 = vld [vmem:[%s972] sm:$0xff]
        %v974 = vlaneseq
        %v975 = vshrl.u32 %v974, 7
        %v976 = vsub.s32 0, %v975
        %v977 = vrot.slane %v967, %v976
        %v978 = vmul.f32 %v955, %v977
        %v979 = vlaneseq
        %v980 = vshrl.u32 %v979, 7
        %v981 = vsub.s32 1, %v980
        %v982 = vrot.slane %v964, %v981
        %v983 = vadd.f32 %v978, %v982
        %v984 = vadd.f32 %v983, %v973
        %v985 = vmax.f32 %v984, 0.0
        %986 = vst [vmem:[%s294] sm:$0xff] %v985
        %s987 = sand.u32 %s147, 1
        %s988 = scalar_lea.sflag [#allocation6], %s987
        %s989 = sand.u32 %s147, 1
        %s990 = smul.addr %s989, 8
        %s991 = scalar_lea.vmem [#allocation12], %s990
        // Predicated region
        $region61: #{tpu_custom_call.1} parent=39 // pred_check
          %p992 = pneg %p157
        $region62: #{tpu_custom_call.1} parent=39 // pred_check_branch
          %994 = sbr.rel (%p992) target = $region64
        $region63: #{tpu_custom_call.1} parent=39 // pred_region
          %s996 = ssub.s32 128, 128
          %997 = vsyncadd %s988, %s996
          %s998 = smul.addr %s24, 128
          %s999 = scalar_lea.hbm %s5, %s998
          %s1001 = sshll.u32 %s991, 4
          %s1002 = int_to_ptr.vmem [resolvable:$true] %s1001
          %1004 = dma.vmem_to_hbm [thread:$0]  %s1002, 128, %s999, %s988
        $region64: #{tpu_custom_call.1} parent=39 // pred_fallthru
          _
      $region40: #{tpu_custom_call.1} parent=5 // pred_fallthru
        _
      %p1005 = scmp.le.s32.totalorder 2, %s19
      // Predicated region
      $region65: #{tpu_custom_call.1} parent=5 // pred_check
        %p1006 = pneg %p1005
      $region66: #{tpu_custom_call.1} parent=5 // pred_check_branch
        %1008 = sbr.rel (%p1006) target = $region68
      $region67: #{tpu_custom_call.1} parent=5 // pred_region
        %s1009 = ssub.s32 %s19, 2
        // Predicated region
        $region69: #{tpu_custom_call.1} parent=67 // pred_check
          %p1010 = pneg %p163
        $region70: #{tpu_custom_call.1} parent=67 // pred_check_branch
          %1012 = sbr.rel (%p1010) target = $region72
        $region71: #{tpu_custom_call.1} parent=67 // pred_region
          %s1013 = sand.u32 %s148, 1
          %s1014 = scalar_lea.sflag [#allocation6], %s1013
          %s1015 = sand.u32 %s148, 1
          %s1016 = smul.addr %s1015, 8
          %s1017 = scalar_lea.vmem [#allocation12], %s1016
          %1018 = dma.done %s1014, 128
        $region72: #{tpu_custom_call.1} parent=67 // pred_fallthru
          _
      $region68: #{tpu_custom_call.1} parent=5 // pred_fallthru
        _
    $region6: #{tpu_custom_call.1} parent=1 // loop_footer
      %s23 = sadd.s32 1, %s19
    $region7: #{tpu_custom_call.1} parent=1 // loop_footer_branch
      %18 = sbr.rel target = $region3
    $region8: #{tpu_custom_call.1} parent=1 // loop_exit
      _
    %1019 = vsyncpa [#allocation5], 1
    %s1020 = scalar_lea.sflag [#allocation5], 1
    %1021 = vsyncpa %s1020, 1
    %1022 = vsyncpa [#allocation8], 1
    %1023 = vsyncpa [#allocation11], 1
    %s1024 = scalar_lea.sflag [#allocation11], 1
    %1025 = vsyncpa %s1024, 1
    %1026 = vsyncpa [#allocation6], 1
    %s1027 = scalar_lea.sflag [#allocation6], 1
    %1028 = vsyncpa %s1027, 1

</llo_original>
